<compile_context>
chip_gen: v5e
topology: v5e:2x2
jax: 0.10.0
libtpu: 0.0.40
codegen_flags: <defaults>
</compile_context>

<pallas_src>
import functools

import jax
import jax.numpy as jnp
from jax import lax
from jax.experimental import pallas as pl
from jax.experimental.pallas import tpu as pltpu

EPS = 1e-5

# Row indices inside the packed (N_ROWS[_CALL], row_width) parameter table.
ROW_NG, ROW_NB = 0, 1                 # input BatchNorm1d gamma / beta       (D)
ROW_BE1, ROW_BE2 = 2, 3               # encoder biases                       (H, Z)
ROW_BHEAD = 4                         # fused mean|log_var bias              (2Z)
ROW_BD1, ROW_BD2, ROW_BD3 = 5, 6, 7   # decoder linear biases                (Z, H, D)
ROW_DG, ROW_DB = 8, 9                 # decoder BatchNorm1d gamma / beta     (D)
N_ROWS = 10
# Appended at call time: input-BN batch stats folded into scale / shift.
ROW_XA, ROW_XB = 10, 11               # norm_x = x * a + b                   (D)
N_ROWS_CALL = 12


def _swish(x):
    # Swish with beta = 1.0: x * sigmoid(x)
    return x * jax.nn.sigmoid(x)


# --------------------------------------------------------------------------
# Kernel 1: per-batch-tile forward up to the decoder's pre-BatchNorm output.
# --------------------------------------------------------------------------
def vae_fwd_kernel(input_dim, hidden_dim, z_dim, batch, tile_b, mx_dtype,
                   x_ref, eps_ref, rows_ref,
                   we1_ref, we2_ref, whead_ref, wd1_ref, wd2_ref, wd3_ref,
                   slab_ref, stats_ref):
    D, H, Z = input_dim, hidden_dim, z_dim
    rows = rows_ref[...]

    def row(r, width):                       # (1, width) static slice
        return rows[r:r + 1, :width]

    def mm(a, w_ref, bias_row):
        # Cast matmul operands only (bf16 MXU path on v6e/v7x); f32 accumulate.
        return (jnp.dot(a.astype(mx_dtype), w_ref[...].astype(mx_dtype),
                        preferred_element_type=jnp.float32) + bias_row)

    x = x_ref[...]

    # Input BatchNorm1d: whole-batch stats precomputed in the wrapper and
    # folded into a single scale/shift (legal under the batch grid).
    norm_x = x * row(ROW_XA, D) + row(ROW_XB, D)

    # encoder: Linear -> Swish -> Linear -> Swish
    h = _swish(mm(norm_x, we1_ref, row(ROW_BE1, H)))
    h = _swish(mm(h, we2_ref, row(ROW_BE2, Z)))

    # fused mean | log_var head: single (Z, 2Z) matmul
    mlv = mm(h, whead_ref, row(ROW_BHEAD, 2 * Z))
    mean_x = mlv[:, :Z]
    lv_x = mlv[:, Z:]

    # reparameterize: std = exp(0.5 * log_var); z = mean + std * epsilon
    z = mean_x + jnp.exp(0.5 * lv_x) * eps_ref[...]

    # decoder: Linear -> Swish -> Linear -> Swish -> Linear (pre-BatchNorm)
    d = _swish(mm(z, wd1_ref, row(ROW_BD1, Z)))
    d = _swish(mm(d, wd2_ref, row(ROW_BD2, H)))
    d = mm(d, wd3_ref, row(ROW_BD3, D))

    # One lane-dense output slab: [ d_preBN | norm_x | mean|log_var ].
    slab_ref[...] = jnp.concatenate([d, norm_x, mlv], axis=1)

    # Per-tile partial sums for the decoder BatchNorm batch statistics.
    if batch % tile_b == 0:
        dm = d
    else:
        ridx = (lax.broadcasted_iota(jnp.int32, (tile_b, 1), 0)
                + pl.program_id(0) * tile_b)
        dm = jnp.where(ridx < batch, d, 0.0)   # mask padded rows of ragged tile
    s1 = jnp.sum(dm, axis=0, keepdims=True)
    s2 = jnp.sum(dm * dm, axis=0, keepdims=True)
    stats_ref[...] = jnp.concatenate([s1, s2], axis=0)[None, :, :]


# --------------------------------------------------------------------------
# Kernel 2: apply the decoder BatchNorm as a lane-dense affine over the slab
# (identity scale/shift on the norm_x / mlv columns), rewriting it in place.
# --------------------------------------------------------------------------
def affine_kernel(slab_ref, ab_ref, out_ref):
    out_ref[...] = slab_ref[...] * ab_ref[0:1, :] + ab_ref[1:2, :]


# --------------------------------------------------------------------------
# Parameters
# --------------------------------------------------------------------------
def init_params(key, input_dim):
    """Deterministic parameter init mirroring VAE.__init__ shapes.

    Linear weights are stored transposed vs. PyTorch, i.e. (in, out), so
    y = x @ W + b.  All (1, N) row parameters are packed into a single
    (N_ROWS, row_width) table.
    """
    hidden_dim = max(input_dim // 2, 16)
    z_dim = max(input_dim // 4, 8)
    row_width = max(input_dim, hidden_dim, 2 * z_dim)

    def linear(key, fan_in, fan_out):
        kw, kb = jax.random.split(key)
        bound = 1.0 / (fan_in ** 0.5)
        w = jax.random.uniform(kw, (fan_in, fan_out), jnp.float32, -bound, bound)
        b = jax.random.uniform(kb, (fan_out,), jnp.float32, -bound, bound)
        return w, b

    keys = jax.random.split(key, 7)
    we1, be1 = linear(keys[0], input_dim, hidden_dim)
    we2, be2 = linear(keys[1], hidden_dim, z_dim)
    wm, bm = linear(keys[2], z_dim, z_dim)
    wlv, blv = linear(keys[3], z_dim, z_dim)
    wd1, bd1 = linear(keys[4], z_dim, z_dim)
    wd2, bd2 = linear(keys[5], z_dim, hidden_dim)
    wd3, bd3 = linear(keys[6], hidden_dim, input_dim)

    # Fused mean|log_var head weight: (z_dim, 2*z_dim)
    whead = jnp.concatenate([wm, wlv], axis=1)
    bhead = jnp.concatenate([bm, blv], axis=0)

    rows = jnp.zeros((N_ROWS, row_width), jnp.float32)
    rows = rows.at[ROW_NG, :input_dim].set(1.0)     # BN weight = 1
    rows = rows.at[ROW_NB, :input_dim].set(0.0)     # BN bias   = 0
    rows = rows.at[ROW_BE1, :hidden_dim].set(be1)
    rows = rows.at[ROW_BE2, :z_dim].set(be2)
    rows = rows.at[ROW_BHEAD, :2 * z_dim].set(bhead)
    rows = rows.at[ROW_BD1, :z_dim].set(bd1)
    rows = rows.at[ROW_BD2, :hidden_dim].set(bd2)
    rows = rows.at[ROW_BD3, :input_dim].set(bd3)
    rows = rows.at[ROW_DG, :input_dim].set(1.0)
    rows = rows.at[ROW_DB, :input_dim].set(0.0)

    params = (rows, we1, we2, whead, wd1, wd2, wd3)
    return params, hidden_dim, z_dim


# --------------------------------------------------------------------------
# Wrapper
# --------------------------------------------------------------------------
@functools.partial(jax.jit, static_argnames=("input_dim", "hidden_dim", "z_dim",
                                              "tile_b", "use_bf16"))
def vae_forward(x, epsilon, params, *, input_dim, hidden_dim, z_dim,
                tile_b=256, use_bf16=False):
    """Batch-gridded fused VAE forward. Returns (x_hat, norm_x, mean_x, lv_x)."""
    rows, we1, we2, whead, wd1, wd2, wd3 = params
    B, D = x.shape
    H, Z = hidden_dim, z_dim
    assert D == input_dim
    w_slab = 2 * D + 2 * Z

    # Batch tile (multiple of 8 sublanes, or the full batch if it is smaller).
    TB = B if B <= tile_b else tile_b
    if TB != B:
        assert TB % 8 == 0, "tile_b must be a multiple of 8 sublanes"
    n_tiles = pl.cdiv(B, TB)

    # ---- Input BatchNorm1d batch statistics (tiny wrapper reduction), folded
    # into one scale/shift row pair appended to the packed table. ----
    gamma_in = rows[ROW_NG:ROW_NG + 1, :D]
    beta_in = rows[ROW_NB:ROW_NB + 1, :D]
    mu_x = jnp.mean(x, axis=0, keepdims=True)
    var_x = jnp.mean((x - mu_x) ** 2, axis=0, keepdims=True)
    a_in = gamma_in * lax.rsqrt(var_x + EPS)
    b_in = beta_in - mu_x * a_in
    w_row = rows.shape[1]
    pad = w_row - D
    rows_call = jnp.concatenate(
        [rows,
         jnp.pad(a_in, ((0, 0), (0, pad))),
         jnp.pad(b_in, ((0, 0), (0, pad)))], axis=0)          # (N_ROWS_CALL, w_row)

    mx_dtype = jnp.bfloat16 if use_bf16 else jnp.float32
    kernel = functools.partial(vae_fwd_kernel, D, H, Z, B, TB, mx_dtype)

    const2 = lambda i: (0, 0)   # weights / rows stay VMEM-resident across tiles
    in_specs = [
        pl.BlockSpec((TB, D), lambda i: (i, 0)),              # x
        pl.BlockSpec((TB, Z), lambda i: (i, 0)),              # epsilon
        pl.BlockSpec((N_ROWS_CALL, w_row), const2),           # packed rows
        pl.BlockSpec(we1.shape, const2),
        pl.BlockSpec(we2.shape, const2),
        pl.BlockSpec(whead.shape, const2),
        pl.BlockSpec(wd1.shape, const2),
        pl.BlockSpec(wd2.shape, const2),
        pl.BlockSpec(wd3.shape, const2),
    ]
    out_specs = (
        pl.BlockSpec((TB, w_slab), lambda i: (i, 0)),         # lane-dense slab
        pl.BlockSpec((1, 2, D), lambda i: (i, 0, 0)),         # partial BN stats
    )
    out_shape = (
        jax.ShapeDtypeStruct((B, w_slab), jnp.float32),
        jax.ShapeDtypeStruct((n_tiles, 2, D), jnp.float32),
    )

    # VMEM budget: resident weights + double-buffered batch tiles + headroom.
    # (Re-derive / cap near ~48 MiB when targeting v7x's 64 MiB VMEM.)
    weight_bytes = 4 * (rows_call.size + we1.size + we2.size + whead.size
                        + wd1.size + wd2.size + wd3.size)
    tile_bytes = 4 * (TB * (D + Z + w_slab) + 2 * D)
    vmem_limit = int(min(max(2 * weight_bytes + 4 * tile_bytes + (8 << 20),
                             16 << 20), 96 << 20))

    flops = 2 * B * (D * H + H * Z + Z * 2 * Z + Z * Z + Z * H + H * D)
    transcendentals = B * (2 * H + 3 * Z)
    bytes_accessed = 4 * (x.size + epsilon.size + rows_call.size
                          + we1.size + we2.size + whead.size
                          + wd1.size + wd2.size + wd3.size
                          + B * w_slab + n_tiles * 2 * D)

    slab, stats = pl.pallas_call(
        kernel,
        grid=(n_tiles,),
        in_specs=in_specs,
        out_specs=out_specs,
        out_shape=out_shape,
        compiler_params=pltpu.CompilerParams(
            dimension_semantics=("parallel",),
            vmem_limit_bytes=vmem_limit),
        cost_estimate=pl.CostEstimate(flops=flops,
                                      transcendentals=transcendentals,
                                      bytes_accessed=bytes_accessed),
    )(x, epsilon, rows_call, we1, we2, whead, wd1, wd2, wd3)

    # ---- Decoder BatchNorm1d: combine per-tile partial sums, build a
    # full-width scale/shift (identity over the norm_x / mlv columns). ----
    tot = jnp.sum(stats, axis=0)                               # (2, D)
    mean_d = tot[0] / B
    var_d = tot[1] / B - mean_d * mean_d
    gamma_d = rows[ROW_DG, :D]
    beta_d = rows[ROW_DB, :D]
    a_d = gamma_d * lax.rsqrt(var_d + EPS)
    b_d = beta_d - mean_d * a_d
    ones = jnp.ones((D + 2 * Z,), jnp.float32)
    zeros = jnp.zeros((D + 2 * Z,), jnp.float32)
    ab = jnp.stack([jnp.concatenate([a_d, ones]),
                    jnp.concatenate([b_d, zeros])], axis=0)    # (2, w_slab)

    slab_out = pl.pallas_call(
        affine_kernel,
        grid=(n_tiles,),
        in_specs=[pl.BlockSpec((TB, w_slab), lambda i: (i, 0)),
                  pl.BlockSpec((2, w_slab), lambda i: (0, 0))],
        out_specs=pl.BlockSpec((TB, w_slab), lambda i: (i, 0)),
        out_shape=jax.ShapeDtypeStruct((B, w_slab), jnp.float32),
        input_output_aliases={0: 0},
        compiler_params=pltpu.CompilerParams(
            dimension_semantics=("parallel",),
            vmem_limit_bytes=vmem_limit),
    )(slab, ab)

    x_hat = slab_out[:, :D]
    norm_x = slab_out[:, D:2 * D]
    mean_x = slab_out[:, 2 * D:2 * D + Z]
    lv_x = slab_out[:, 2 * D + Z:]
    return x_hat, norm_x, mean_x, lv_x


# --------------------------------------------------------------------------
# Pure-JAX reference with the original (PyTorch-style) formulation.
# --------------------------------------------------------------------------
def vae_forward_ref(x, epsilon, params, input_dim, hidden_dim, z_dim):
    rows, we1, we2, whead, wd1, wd2, wd3 = params

    def row(r, w):
        return rows[r:r + 1, :w]

    def bn(v, g, b):
        mu = jnp.mean(v, axis=0, keepdims=True)
        var = jnp.mean((v - mu) ** 2, axis=0, keepdims=True)
        return (v - mu) / jnp.sqrt(var + EPS) * g + b

    norm_x = bn(x, row(ROW_NG, input_dim), row(ROW_NB, input_dim))
    h = _swish(norm_x @ we1 + row(ROW_BE1, hidden_dim))
    h = _swish(h @ we2 + row(ROW_BE2, z_dim))
    bh = row(ROW_BHEAD, 2 * z_dim)
    mean_x = h @ whead[:, :z_dim] + bh[:, :z_dim]
    lv_x = h @ whead[:, z_dim:] + bh[:, z_dim:]
    z = mean_x + (jnp.exp(lv_x) ** 0.5) * epsilon
    d = _swish(z @ wd1 + row(ROW_BD1, z_dim))
    d = _swish(d @ wd2 + row(ROW_BD2, hidden_dim))
    d = d @ wd3 + row(ROW_BD3, input_dim)
    x_hat = bn(d, row(ROW_DG, input_dim), row(ROW_DB, input_dim))
    return x_hat, norm_x, mean_x, lv_x


if __name__ == "__main__":
    key = jax.random.PRNGKey(0)
    k_x, k_eps, k_par, k_x2, k_eps2 = jax.random.split(key, 5)

    input_dim = 32              # -> hidden_dim = 16, z_dim = 8
    abnormal_rate = 0.05        # unused in forward (kept for parity with __init__)
    params, hidden_dim, z_dim = init_params(k_par, input_dim)

    def check(outs, refs, atol):
        for o, r in zip(outs, refs):
            assert o.shape == r.shape and o.dtype == r.dtype
            assert jnp.allclose(o, r, atol=atol, rtol=atol), "mismatch vs reference"

    # Config 1: batch divides the tile evenly -> grid=(2,)
    B1 = 16
    x1 = jax.random.normal(k_x, (B1, input_dim), jnp.float32)
    e1 = jax.random.normal(k_eps, (B1, z_dim), jnp.float32)   # torch.normal(0,1,...)
    out1 = jax.block_until_ready(vae_forward(
        x1, e1, params, input_dim=input_dim, hidden_dim=hidden_dim,
        z_dim=z_dim, tile_b=8))
    check(out1, vae_forward_ref(x1, e1, params, input_dim, hidden_dim, z_dim), 1e-4)

    # Config 2: ragged last batch tile (masked partial-stats path), grid=(2,)
    B2 = 12
    x2 = jax.random.normal(k_x2, (B2, input_dim), jnp.float32)
    e2 = jax.random.normal(k_eps2, (B2, z_dim), jnp.float32)
    out2 = jax.block_until_ready(vae_forward(
        x2, e2, params, input_dim=input_dim, hidden_dim=hidden_dim,
        z_dim=z_dim, tile_b=8))
    check(out2, vae_forward_ref(x2, e2, params, input_dim, hidden_dim, z_dim), 1e-4)

    # bf16 MXU-operand path (large-D lever on v6e/v7x): smoke test only.
    out3 = jax.block_until_ready(vae_forward(
        x1, e1, params, input_dim=input_dim, hidden_dim=hidden_dim,
        z_dim=z_dim, tile_b=8, use_bf16=True))
    for o in out3:
        assert bool(jnp.all(jnp.isfinite(o)))

    print("KERNEL_OK")
</pallas_src>

<mosaic_0001>
module attributes {stable_mosaic.version = 11 : i64} {
  func.func @vae_fwd_kernel(%arg0: i32, %arg1: memref<8x32xf32, #tpu.memory_space<vmem>>, %arg2: memref<8x8xf32, #tpu.memory_space<vmem>>, %arg3: memref<12x32xf32, #tpu.memory_space<vmem>>, %arg4: memref<32x16xf32, #tpu.memory_space<vmem>>, %arg5: memref<16x8xf32, #tpu.memory_space<vmem>>, %arg6: memref<8x16xf32, #tpu.memory_space<vmem>>, %arg7: memref<8x8xf32, #tpu.memory_space<vmem>>, %arg8: memref<8x16xf32, #tpu.memory_space<vmem>>, %arg9: memref<16x32xf32, #tpu.memory_space<vmem>>, %arg10: memref<8x80xf32, #tpu.memory_space<vmem>>, %arg11: memref<1x2x32xf32, #tpu.memory_space<vmem>>) attributes {dimension_semantics = [#tpu.dimension_semantics<parallel>], iteration_bounds = array<i64: 2>, scalar_prefetch = 0 : i64, scratch_operands = 0 : i64, tpu.core_type = #tpu.core_type<tc>, window_params = [{transform_indices = @transform_0, window_bounds = array<i64: 8, 32>}, {transform_indices = @transform_1, window_bounds = array<i64: 8, 8>}, {pipeline_mode = #tpu.pipeline_mode<synchronous>, transform_indices = @transform_2, window_bounds = array<i64: 12, 32>}, {pipeline_mode = #tpu.pipeline_mode<synchronous>, transform_indices = @transform_3, window_bounds = array<i64: 32, 16>}, {pipeline_mode = #tpu.pipeline_mode<synchronous>, transform_indices = @transform_4, window_bounds = array<i64: 16, 8>}, {pipeline_mode = #tpu.pipeline_mode<synchronous>, transform_indices = @transform_5, window_bounds = array<i64: 8, 16>}, {pipeline_mode = #tpu.pipeline_mode<synchronous>, transform_indices = @transform_6, window_bounds = array<i64: 8, 8>}, {pipeline_mode = #tpu.pipeline_mode<synchronous>, transform_indices = @transform_7, window_bounds = array<i64: 8, 16>}, {pipeline_mode = #tpu.pipeline_mode<synchronous>, transform_indices = @transform_8, window_bounds = array<i64: 16, 32>}, {transform_indices = @transform_9, window_bounds = array<i64: 8, 80>}, {transform_indices = @transform_10, window_bounds = array<i64: 1, 2, 32>}]} {
    %c0 = arith.constant 0 : index
    %c0_0 = arith.constant 0 : index
    %0 = vector.load %arg3[%c0, %c0_0] : memref<12x32xf32, #tpu.memory_space<vmem>>, vector<12x32xf32>
    %c0_1 = arith.constant 0 : index
    %c0_2 = arith.constant 0 : index
    %1 = vector.load %arg1[%c0_1, %c0_2] : memref<8x32xf32, #tpu.memory_space<vmem>>, vector<8x32xf32>
    %2 = vector.extract_strided_slice %0 {offsets = [10, 0], sizes = [1, 32], strides = [1, 1]} : vector<12x32xf32> to vector<1x32xf32>
    %3 = vector.broadcast %2 : vector<1x32xf32> to vector<8x32xf32>
    %4 = arith.mulf %1, %3 : vector<8x32xf32>
    %5 = vector.extract_strided_slice %0 {offsets = [11, 0], sizes = [1, 32], strides = [1, 1]} : vector<12x32xf32> to vector<1x32xf32>
    %6 = vector.broadcast %5 : vector<1x32xf32> to vector<8x32xf32>
    %7 = arith.addf %4, %6 : vector<8x32xf32>
    %8 = vector.extract_strided_slice %0 {offsets = [2, 0], sizes = [1, 16], strides = [1, 1]} : vector<12x32xf32> to vector<1x16xf32>
    %c0_3 = arith.constant 0 : index
    %c0_4 = arith.constant 0 : index
    %9 = vector.load %arg4[%c0_3, %c0_4] : memref<32x16xf32, #tpu.memory_space<vmem>>, vector<32x16xf32>
    %cst = arith.constant dense<0.000000e+00> : vector<8x16xf32>
    %10 = tpu.matmul %7, %9, %cst {dimension_numbers = #tpu.dot_dimension_numbers<[1], [0], [0], [1], [0, 0, 1, 1], [], []>} : vector<8x32xf32>, vector<32x16xf32>, vector<8x16xf32> -> vector<8x16xf32>
    %11 = vector.broadcast %8 : vector<1x16xf32> to vector<8x16xf32>
    %12 = arith.addf %10, %11 : vector<8x16xf32>
    %13 = arith.negf %12 : vector<8x16xf32>
    %14 = math.exp %13 : vector<8x16xf32>
    %cst_5 = arith.constant 1.000000e+00 : f32
    %15 = vector.broadcast %cst_5 : f32 to vector<8x16xf32>
    %16 = arith.addf %15, %14 : vector<8x16xf32>
    %17 = arith.divf %15, %16 : vector<8x16xf32>
    %18 = arith.mulf %12, %17 : vector<8x16xf32>
    %19 = vector.extract_strided_slice %0 {offsets = [3, 0], sizes = [1, 8], strides = [1, 1]} : vector<12x32xf32> to vector<1x8xf32>
    %c0_6 = arith.constant 0 : index
    %c0_7 = arith.constant 0 : index
    %20 = vector.load %arg5[%c0_6, %c0_7] : memref<16x8xf32, #tpu.memory_space<vmem>>, vector<16x8xf32>
    %cst_8 = arith.constant dense<0.000000e+00> : vector<8x8xf32>
    %21 = tpu.matmul %18, %20, %cst_8 {dimension_numbers = #tpu.dot_dimension_numbers<[1], [0], [0], [1], [0, 0, 1, 1], [], []>} : vector<8x16xf32>, vector<16x8xf32>, vector<8x8xf32> -> vector<8x8xf32>
    %22 = vector.broadcast %19 : vector<1x8xf32> to vector<8x8xf32>
    %23 = arith.addf %21, %22 : vector<8x8xf32>
    %24 = arith.negf %23 : vector<8x8xf32>
    %25 = math.exp %24 : vector<8x8xf32>
    %cst_9 = arith.constant 1.000000e+00 : f32
    %26 = vector.broadcast %cst_9 : f32 to vector<8x8xf32>
    %27 = arith.addf %26, %25 : vector<8x8xf32>
    %28 = arith.divf %26, %27 : vector<8x8xf32>
    %29 = arith.mulf %23, %28 : vector<8x8xf32>
    %30 = vector.extract_strided_slice %0 {offsets = [4, 0], sizes = [1, 16], strides = [1, 1]} : vector<12x32xf32> to vector<1x16xf32>
    %c0_10 = arith.constant 0 : index
    %c0_11 = arith.constant 0 : index
    %31 = vector.load %arg6[%c0_10, %c0_11] : memref<8x16xf32, #tpu.memory_space<vmem>>, vector<8x16xf32>
    %cst_12 = arith.constant dense<0.000000e+00> : vector<8x16xf32>
    %32 = tpu.matmul %29, %31, %cst_12 {dimension_numbers = #tpu.dot_dimension_numbers<[1], [0], [0], [1], [0, 0, 1, 1], [], []>} : vector<8x8xf32>, vector<8x16xf32>, vector<8x16xf32> -> vector<8x16xf32>
    %33 = vector.broadcast %30 : vector<1x16xf32> to vector<8x16xf32>
    %34 = arith.addf %32, %33 : vector<8x16xf32>
    %35 = vector.extract_strided_slice %34 {offsets = [0, 0], sizes = [8, 8], strides = [1, 1]} : vector<8x16xf32> to vector<8x8xf32>
    %36 = vector.extract_strided_slice %34 {offsets = [0, 8], sizes = [8, 8], strides = [1, 1]} : vector<8x16xf32> to vector<8x8xf32>
    %cst_13 = arith.constant 5.000000e-01 : f32
    %37 = vector.broadcast %cst_13 : f32 to vector<8x8xf32>
    %38 = arith.mulf %37, %36 : vector<8x8xf32>
    %39 = math.exp %38 : vector<8x8xf32>
    %c0_14 = arith.constant 0 : index
    %c0_15 = arith.constant 0 : index
    %40 = vector.load %arg2[%c0_14, %c0_15] : memref<8x8xf32, #tpu.memory_space<vmem>>, vector<8x8xf32>
    %41 = arith.mulf %39, %40 : vector<8x8xf32>
    %42 = arith.addf %35, %41 : vector<8x8xf32>
    %43 = vector.extract_strided_slice %0 {offsets = [5, 0], sizes = [1, 8], strides = [1, 1]} : vector<12x32xf32> to vector<1x8xf32>
    %c0_16 = arith.constant 0 : index
    %c0_17 = arith.constant 0 : index
    %44 = vector.load %arg7[%c0_16, %c0_17] : memref<8x8xf32, #tpu.memory_space<vmem>>, vector<8x8xf32>
    %cst_18 = arith.constant dense<0.000000e+00> : vector<8x8xf32>
    %45 = tpu.matmul %42, %44, %cst_18 {dimension_numbers = #tpu.dot_dimension_numbers<[1], [0], [0], [1], [0, 0, 1, 1], [], []>} : vector<8x8xf32>, vector<8x8xf32>, vector<8x8xf32> -> vector<8x8xf32>
    %46 = vector.broadcast %43 : vector<1x8xf32> to vector<8x8xf32>
    %47 = arith.addf %45, %46 : vector<8x8xf32>
    %48 = arith.negf %47 : vector<8x8xf32>
    %49 = math.exp %48 : vector<8x8xf32>
    %cst_19 = arith.constant 1.000000e+00 : f32
    %50 = vector.broadcast %cst_19 : f32 to vector<8x8xf32>
    %51 = arith.addf %50, %49 : vector<8x8xf32>
    %52 = arith.divf %50, %51 : vector<8x8xf32>
    %53 = arith.mulf %47, %52 : vector<8x8xf32>
    %54 = vector.extract_strided_slice %0 {offsets = [6, 0], sizes = [1, 16], strides = [1, 1]} : vector<12x32xf32> to vector<1x16xf32>
    %c0_20 = arith.constant 0 : index
    %c0_21 = arith.constant 0 : index
    %55 = vector.load %arg8[%c0_20, %c0_21] : memref<8x16xf32, #tpu.memory_space<vmem>>, vector<8x16xf32>
    %cst_22 = arith.constant dense<0.000000e+00> : vector<8x16xf32>
    %56 = tpu.matmul %53, %55, %cst_22 {dimension_numbers = #tpu.dot_dimension_numbers<[1], [0], [0], [1], [0, 0, 1, 1], [], []>} : vector<8x8xf32>, vector<8x16xf32>, vector<8x16xf32> -> vector<8x16xf32>
    %57 = vector.broadcast %54 : vector<1x16xf32> to vector<8x16xf32>
    %58 = arith.addf %56, %57 : vector<8x16xf32>
    %59 = arith.negf %58 : vector<8x16xf32>
    %60 = math.exp %59 : vector<8x16xf32>
    %cst_23 = arith.constant 1.000000e+00 : f32
    %61 = vector.broadcast %cst_23 : f32 to vector<8x16xf32>
    %62 = arith.addf %61, %60 : vector<8x16xf32>
    %63 = arith.divf %61, %62 : vector<8x16xf32>
    %64 = arith.mulf %58, %63 : vector<8x16xf32>
    %65 = vector.extract_strided_slice %0 {offsets = [7, 0], sizes = [1, 32], strides = [1, 1]} : vector<12x32xf32> to vector<1x32xf32>
    %c0_24 = arith.constant 0 : index
    %c0_25 = arith.constant 0 : index
    %66 = vector.load %arg9[%c0_24, %c0_25] : memref<16x32xf32, #tpu.memory_space<vmem>>, vector<16x32xf32>
    %cst_26 = arith.constant dense<0.000000e+00> : vector<8x32xf32>
    %67 = tpu.matmul %64, %66, %cst_26 {dimension_numbers = #tpu.dot_dimension_numbers<[1], [0], [0], [1], [0, 0, 1, 1], [], []>} : vector<8x16xf32>, vector<16x32xf32>, vector<8x32xf32> -> vector<8x32xf32>
    %68 = vector.broadcast %65 : vector<1x32xf32> to vector<8x32xf32>
    %69 = arith.addf %67, %68 : vector<8x32xf32>
    %70 = tpu.concatenate %69, %7, %34 in 1 : vector<8x32xf32>, vector<8x32xf32>, vector<8x16xf32> -> vector<8x80xf32>
    %c0_27 = arith.constant 0 : index
    %c0_28 = arith.constant 0 : index
    %71 = vector.load %arg10[%c0_27, %c0_28] : memref<8x80xf32, #tpu.memory_space<vmem>>, vector<8x80xf32>
    tpu.vector_store %arg10[%c0_27, %c0_28], %70 {strides = array<i32>} : memref<8x80xf32, #tpu.memory_space<vmem>>, vector<8x80xf32>,
    %cst_29 = arith.constant dense<0.000000e+00> : vector<32xf32>
    %72 = vector.multi_reduction <add>, %69, %cst_29 [0] : vector<8x32xf32> to vector<32xf32>
    %73 = vector.shape_cast %72 : vector<32xf32> to vector<1x32xf32>
    %74 = arith.mulf %69, %69 : vector<8x32xf32>
    %cst_30 = arith.constant dense<0.000000e+00> : vector<32xf32>
    %75 = vector.multi_reduction <add>, %74, %cst_30 [0] : vector<8x32xf32> to vector<32xf32>
    %76 = vector.shape_cast %75 : vector<32xf32> to vector<1x32xf32>
    %77 = tpu.concatenate %73, %76 in 0 : vector<1x32xf32>, vector<1x32xf32> -> vector<2x32xf32>
    %78 = vector.shape_cast %77 : vector<2x32xf32> to vector<1x2x32xf32>
    %c0_31 = arith.constant 0 : index
    %c0_32 = arith.constant 0 : index
    %c0_33 = arith.constant 0 : index
    %79 = vector.load %arg11[%c0_31, %c0_32, %c0_33] : memref<1x2x32xf32, #tpu.memory_space<vmem>>, vector<1x2x32xf32>
    tpu.vector_store %arg11[%c0_31, %c0_32, %c0_33], %78 {strides = array<i32>} : memref<1x2x32xf32, #tpu.memory_space<vmem>>, vector<1x2x32xf32>,
    return
  }
  func.func @transform_0(%arg0: i32) -> (i32, i32) {
    %c0_i32 = arith.constant 0 : i32
    %c0_i32_0 = arith.constant 0 : i32
    return %arg0, %c0_i32 : i32, i32
  }
  func.func @transform_1(%arg0: i32) -> (i32, i32) {
    %c0_i32 = arith.constant 0 : i32
    %c0_i32_0 = arith.constant 0 : i32
    return %arg0, %c0_i32 : i32, i32
  }
  func.func @transform_2(%arg0: i32) -> (i32, i32) {
    %c0_i32 = arith.constant 0 : i32
    %c0_i32_0 = arith.constant 0 : i32
    %c0_i32_1 = arith.constant 0 : i32
    return %c0_i32, %c0_i32_0 : i32, i32
  }
  func.func @transform_3(%arg0: i32) -> (i32, i32) {
    %c0_i32 = arith.constant 0 : i32
    %c0_i32_0 = arith.constant 0 : i32
    %c0_i32_1 = arith.constant 0 : i32
    return %c0_i32, %c0_i32_0 : i32, i32
  }
  func.func @transform_4(%arg0: i32) -> (i32, i32) {
    %c0_i32 = arith.constant 0 : i32
    %c0_i32_0 = arith.constant 0 : i32
    %c0_i32_1 = arith.constant 0 : i32
    return %c0_i32, %c0_i32_0 : i32, i32
  }
  func.func @transform_5(%arg0: i32) -> (i32, i32) {
    %c0_i32 = arith.constant 0 : i32
    %c0_i32_0 = arith.constant 0 : i32
    %c0_i32_1 = arith.constant 0 : i32
    return %c0_i32, %c0_i32_0 : i32, i32
  }
  func.func @transform_6(%arg0: i32) -> (i32, i32) {
    %c0_i32 = arith.constant 0 : i32
    %c0_i32_0 = arith.constant 0 : i32
    %c0_i32_1 = arith.constant 0 : i32
    return %c0_i32, %c0_i32_0 : i32, i32
  }
  func.func @transform_7(%arg0: i32) -> (i32, i32) {
    %c0_i32 = arith.constant 0 : i32
    %c0_i32_0 = arith.constant 0 : i32
    %c0_i32_1 = arith.constant 0 : i32
    return %c0_i32, %c0_i32_0 : i32, i32
  }
  func.func @transform_8(%arg0: i32) -> (i32, i32) {
    %c0_i32 = arith.constant 0 : i32
    %c0_i32_0 = arith.constant 0 : i32
    %c0_i32_1 = arith.constant 0 : i32
    return %c0_i32, %c0_i32_0 : i32, i32
  }
  func.func @transform_9(%arg0: i32) -> (i32, i32) {
    %c0_i32 = arith.constant 0 : i32
    %c0_i32_0 = arith.constant 0 : i32
    return %arg0, %c0_i32 : i32, i32
  }
  func.func @transform_10(%arg0: i32) -> (i32, i32, i32) {
    %c0_i32 = arith.constant 0 : i32
    %c0_i32_0 = arith.constant 0 : i32
    %c0_i32_1 = arith.constant 0 : i32
    return %arg0, %c0_i32, %c0_i32_0 : i32, i32, i32
  }
}

module attributes {stable_mosaic.version = 11 : i64} {
  func.func @affine_kernel(%arg0: i32, %arg1: memref<8x80xf32, #tpu.memory_space<vmem>>, %arg2: memref<2x80xf32, #tpu.memory_space<vmem>>, %arg3: memref<8x80xf32, #tpu.memory_space<vmem>>) attributes {dimension_semantics = [#tpu.dimension_semantics<parallel>], iteration_bounds = array<i64: 2>, scalar_prefetch = 0 : i64, scratch_operands = 0 : i64, tpu.core_type = #tpu.core_type<tc>, window_params = [{transform_indices = @transform_0, window_bounds = array<i64: 8, 80>}, {pipeline_mode = #tpu.pipeline_mode<synchronous>, transform_indices = @transform_1, window_bounds = array<i64: 2, 80>}, {transform_indices = @transform_2, window_bounds = array<i64: 8, 80>}]} {
    %c0 = arith.constant 0 : index
    %c0_0 = arith.constant 0 : index
    %0 = vector.load %arg1[%c0, %c0_0] : memref<8x80xf32, #tpu.memory_space<vmem>>, vector<8x80xf32>
    %c0_1 = arith.constant 0 : index
    %c0_2 = arith.constant 0 : index
    %1 = vector.load %arg2[%c0_1, %c0_2] : memref<2x80xf32, #tpu.memory_space<vmem>>, vector<1x80xf32>
    %2 = vector.broadcast %1 : vector<1x80xf32> to vector<8x80xf32>
    %3 = arith.mulf %0, %2 : vector<8x80xf32>
    %c1 = arith.constant 1 : index
    %c0_3 = arith.constant 0 : index
    %4 = vector.load %arg2[%c1, %c0_3] : memref<2x80xf32, #tpu.memory_space<vmem>>, vector<1x80xf32>
    %5 = vector.broadcast %4 : vector<1x80xf32> to vector<8x80xf32>
    %6 = arith.addf %3, %5 : vector<8x80xf32>
    %c0_4 = arith.constant 0 : index
    %c0_5 = arith.constant 0 : index
    %7 = vector.load %arg3[%c0_4, %c0_5] : memref<8x80xf32, #tpu.memory_space<vmem>>, vector<8x80xf32>
    tpu.vector_store %arg3[%c0_4, %c0_5], %6 {strides = array<i32>} : memref<8x80xf32, #tpu.memory_space<vmem>>, vector<8x80xf32>,
    return
  }
  func.func @transform_0(%arg0: i32) -> (i32, i32) {
    %c0_i32 = arith.constant 0 : i32
    %c0_i32_0 = arith.constant 0 : i32
    return %arg0, %c0_i32 : i32, i32
  }
  func.func @transform_1(%arg0: i32) -> (i32, i32) {
    %c0_i32 = arith.constant 0 : i32
    %c0_i32_0 = arith.constant 0 : i32
    %c0_i32_1 = arith.constant 0 : i32
    return %c0_i32, %c0_i32_0 : i32, i32
  }
  func.func @transform_2(%arg0: i32) -> (i32, i32) {
    %c0_i32 = arith.constant 0 : i32
    %c0_i32_0 = arith.constant 0 : i32
    return %arg0, %c0_i32 : i32, i32
  }
}

</mosaic_0001>

<llo_original>
// kernel: vae_forward.3
$region0: #{vae_forward.3}
  #allocation0 [shape = 'u32[]', space=smem, size = 0x4, offset = 0x4, fixed_abs, tag = 'smem constant byte address 0x4 - core index']
  #allocation1 [shape = 'u32[72,128]{1,0:T(1,128)}', space=vmem, size = 0x9000, scoped, tag = 'internal scratch']
  %s0 = inlined_call_operand.vmem [shape: f32[16,80], index: 0, kind: input, shape index: {}, may-alias: {0,2}]
  %s1 = inlined_call_operand.vmem [shape: f32[2,80], index: 1, kind: input, shape index: {}]
  %s2 = inlined_call_operand.vmem [shape: f32[16,80], index: 2, kind: output, shape index: {}, may-alias: {0,2}]
  %s3 = sld [smem:[#allocation0]]
  $region41: #{vae_forward.3} parent=0
    _
  %s5 = ssub.s32 1, %s3
  %s6 = scalar_select 0, %s5, %s3
  loop: start=0, step=1, limit=4
  $region2: #{vae_forward.3} parent=0 // loop_pre_header
    _
  $region3: #{vae_forward.3} parent=0 // loop_header
    %s8 = sphi 0, %s12
    %p9 = scmp.ge.s32.totalorder %s8, 4
    %s18 = sphi 0, %s20
    %s21 = sphi 0, %s18
    %s22 = sphi 0, %s21
    %s38 = sphi 0, %s22
    %s42 = sphi 0, %s42
    %s44 = sphi 0, %s42
    %s45 = sphi 0, %s44
    %s59 = sphi 0, %s45
    %s65 = sphi 0, %s67
    %s68 = sphi 0, %s65
    %s69 = sphi 0, %s68
    %s85 = sphi 0, %s69
  $region4: #{vae_forward.3} parent=0 // loop_header_branch
    %11 = sbr.rel (%p9) target = $region8
  $region5: #{vae_forward.3} parent=0 // loop_body
    %s13 = ssub.s32 %s8, 1
    %s14 = ssub.s32 %s8, 2
    %s15 = sadd.s32 %s8, 1
    %s16 = ssub.s32 %s8, %s15
    %p17 = scmp.eq.s32.totalorder %s16, 0
    %s19 = sadd.s32 %s18, 1
    %s20 = scalar_select %p17, %s18, %s19
    %p23 = pneg %p17
    %p24 = scmp.eq.s32.totalorder %s8, 1
    %p25 = por %p23, %p24
    %p26 = scmp.ne.s32.totalorder %s18, %s21
    %p27 = scmp.eq.s32.totalorder %s8, 0
    %p28 = por %p26, %p27
    %p29 = scmp.ne.s32.totalorder %s18, %s21
    %p30 = scmp.eq.s32.totalorder %s13, 1
    %p31 = por %p29, %p30
    %p32 = scmp.ne.s32.totalorder %s21, %s22
    %p33 = scmp.eq.s32.totalorder %s13, 0
    %p34 = por %p32, %p33
    %p35 = scmp.ne.s32.totalorder %s21, %s22
    %p36 = scmp.eq.s32.totalorder %s14, 1
    %p37 = por %p35, %p36
    %p39 = scmp.ne.s32.totalorder %s22, %s38
    %p40 = scmp.eq.s32.totalorder %s14, 0
    %p41 = por %p39, %p40
    %s43 = sadd.s32 %s42, 1
    %p46 = scmp.eq.s32.totalorder %s8, 1
    %p47 = scmp.ne.s32.totalorder %s42, %s44
    %p48 = scmp.eq.s32.totalorder %s8, 0
    %p49 = por %p47, %p48
    %p50 = scmp.ne.s32.totalorder %s42, %s44
    %p51 = scmp.eq.s32.totalorder %s13, 1
    %p52 = por %p50, %p51
    %p53 = scmp.ne.s32.totalorder %s44, %s45
    %p54 = scmp.eq.s32.totalorder %s13, 0
    %p55 = por %p53, %p54
    %p56 = scmp.ne.s32.totalorder %s44, %s45
    %p57 = scmp.eq.s32.totalorder %s14, 1
    %p58 = por %p56, %p57
    %p60 = scmp.ne.s32.totalorder %s45, %s59
    %p61 = scmp.eq.s32.totalorder %s14, 0
    %p62 = por %p60, %p61
    %s63 = ssub.s32 %s8, %s15
    %p64 = scmp.eq.s32.totalorder %s63, 0
    %s66 = sadd.s32 %s65, 1
    %s67 = scalar_select %p64, %s65, %s66
    %p70 = pneg %p64
    %p71 = scmp.eq.s32.totalorder %s8, 1
    %p72 = por %p70, %p71
    %p73 = scmp.ne.s32.totalorder %s65, %s68
    %p74 = scmp.eq.s32.totalorder %s8, 0
    %p75 = por %p73, %p74
    %p76 = scmp.ne.s32.totalorder %s65, %s68
    %p77 = scmp.eq.s32.totalorder %s13, 1
    %p78 = por %p76, %p77
    %p79 = scmp.ne.s32.totalorder %s68, %s69
    %p80 = scmp.eq.s32.totalorder %s13, 0
    %p81 = por %p79, %p80
    %p82 = scmp.ne.s32.totalorder %s68, %s69
    %p83 = scmp.eq.s32.totalorder %s14, 1
    %p84 = por %p82, %p83
    %p86 = scmp.ne.s32.totalorder %s69, %s85
    %p87 = scmp.eq.s32.totalorder %s14, 0
    %p88 = por %p86, %p87
    %p89 = scmp.le.s32.totalorder 1, %s8
    %p90 = scmp.lt.s32.totalorder %s8, 3
    %p91 = pnand %p89, %p90
    %p92 = pneg %p91
    // Predicated region
    $region9: #{vae_forward.3} parent=5 // pred_check
      _
    $region10: #{vae_forward.3} parent=5 // pred_check_branch
      %94 = sbr.rel (%p91) target = $region12
    $region11: #{vae_forward.3} parent=5 // pred_region
      %s95 = ssub.s32 %s8, 1
      // Predicated region
      $region13: #{vae_forward.3} parent=11 // pred_check
        %p96 = pneg %p55
      $region14: #{vae_forward.3} parent=11 // pred_check_branch
        %98 = sbr.rel (%p96) target = $region16
      $region15: #{vae_forward.3} parent=11 // pred_region
        _
      $region16: #{vae_forward.3} parent=11 // pred_fallthru
        _
    $region12: #{vae_forward.3} parent=5 // pred_fallthru
      _
    %p99 = scmp.lt.s32.totalorder %s8, 2
    // Predicated region
    $region17: #{vae_forward.3} parent=5 // pred_check
      %p100 = pneg %p99
    $region18: #{vae_forward.3} parent=5 // pred_check_branch
      %102 = sbr.rel (%p100) target = $region20
    $region19: #{vae_forward.3} parent=5 // pred_region
      // Predicated region
      $region21: #{vae_forward.3} parent=19 // pred_check
        %p103 = pneg %p28
      $region22: #{vae_forward.3} parent=19 // pred_check_branch
        %105 = sbr.rel (%p103) target = $region24
      $region23: #{vae_forward.3} parent=19 // pred_region
        %p106 = scmp.lt.s32.totalorder %s8, 1
        %s107 = scalar_select %p106, %s8, 1
        %s108 = smul.addr %s107, 8
        %s109 = scalar_lea.vmem %s0, %s108
      $region24: #{vae_forward.3} parent=19 // pred_fallthru
        _
    $region20: #{vae_forward.3} parent=5 // pred_fallthru
      _
    %p110 = scmp.le.s32.totalorder 1, %s8
    %p111 = scmp.lt.s32.totalorder %s8, 3
    %p112 = pnand %p110, %p111
    %p113 = pneg %p112
    // Predicated region
    $region25: #{vae_forward.3} parent=5 // pred_check
      _
    $region26: #{vae_forward.3} parent=5 // pred_check_branch
      %115 = sbr.rel (%p112) target = $region28
    $region27: #{vae_forward.3} parent=5 // pred_region
      %s116 = ssub.s32 %s8, 1
      %p117 = scmp.lt.s32.totalorder %s13, 1
      %s118 = scalar_select %p117, %s13, 1
      %s119 = smul.addr %s118, 8
      %s120 = scalar_lea.vmem %s0, %s119
      %p121 = pneg %p34
      %p122 = pneg %p31
      %p123 = pneg %p55
      %p124 = pneg %p52
      %p125 = pneg %p81
      %p126 = pneg %p78
      %p127 = scmp.lt.s32.totalorder %s13, 1
      %s128 = scalar_select %p127, %s13, 1
      %s129 = smul.addr %s128, 8
      %s130 = scalar_lea.vmem %s2, %s129
      %p131 = scmp.lt.s32.totalorder %s13, 1
      %s132 = scalar_select %p131, %s13, 1
      %s133 = smul.addr %s132, 8
      %s134 = scalar_lea.vmem %s0, %s133
      %p135 = scmp.lt.s32.totalorder %s13, 1
      %s136 = scalar_select %p135, %s13, 1
      %s137 = smul.addr %s136, 8
      %s138 = scalar_lea.vmem %s2, %s137
      %v139 = vld [vmem:[%s134] sm:$0xff]
      %v140 = vld [vmem:[%s1] sm:$0x1]
      %v141 = vperm.slane %v140, 0
      %v142 = vmul.f32 %v139, %v141
      %v143 = vld [vmem:[%s1 + $0x1] sm:$0x1]
      %v144 = vperm.slane %v143, 0
      %v145 = vadd.f32 %v142, %v144
      %vm146 = vcmask 654336
      %147 = vst.msk [vmem:[%s138] sm:$0xff] %vm146, %v145
      %p148 = scmp.lt.s32.totalorder %s13, 1
      %s149 = scalar_select %p148, %s13, 1
      %s150 = smul.addr %s149, 8
      %s151 = scalar_lea.vmem %s2, %s150
      // Predicated region
      $region29: #{vae_forward.3} parent=27 // pred_check
        %p152 = pneg %p78
      $region30: #{vae_forward.3} parent=27 // pred_check_branch
        %154 = sbr.rel (%p152) target = $region32
      $region31: #{vae_forward.3} parent=27 // pred_region
        _
      $region32: #{vae_forward.3} parent=27 // pred_fallthru
        _
    $region28: #{vae_forward.3} parent=5 // pred_fallthru
      _
    %p155 = scmp.le.s32.totalorder 2, %s8
    // Predicated region
    $region33: #{vae_forward.3} parent=5 // pred_check
      %p156 = pneg %p155
    $region34: #{vae_forward.3} parent=5 // pred_check_branch
      %158 = sbr.rel (%p156) target = $region36
    $region35: #{vae_forward.3} parent=5 // pred_region
      %s159 = ssub.s32 %s8, 2
      // Predicated region
      $region37: #{vae_forward.3} parent=35 // pred_check
        %p160 = pneg %p84
      $region38: #{vae_forward.3} parent=35 // pred_check_branch
        %162 = sbr.rel (%p160) target = $region40
      $region39: #{vae_forward.3} parent=35 // pred_region
        %p163 = scmp.lt.s32.totalorder %s14, 1
        %s164 = scalar_select %p163, %s14, 1
        %s165 = smul.addr %s164, 8
        %s166 = scalar_lea.vmem %s2, %s165
      $region40: #{vae_forward.3} parent=35 // pred_fallthru
        _
    $region36: #{vae_forward.3} parent=5 // pred_fallthru
      _
  $region6: #{vae_forward.3} parent=0 // loop_footer
    %s12 = sadd.s32 1, %s8
  $region7: #{vae_forward.3} parent=0 // loop_footer_branch
    %7 = sbr.rel target = $region3
  $region8: #{vae_forward.3} parent=0 // loop_exit
    _

// kernel: vae_forward.2
$region0: #{vae_forward.2}
  #allocation0 [shape = 'u32[]', space=smem, size = 0x4, offset = 0x4, fixed_abs, tag = 'smem constant byte address 0x4 - core index']
  #allocation1 [shape = 'u32[72,128]{1,0:T(1,128)}', space=vmem, size = 0x9000, scoped, tag = 'internal scratch']
  %s0 = inlined_call_operand.vmem [shape: f32[16,32], index: 0, kind: input, shape index: {}]
  %s1 = inlined_call_operand.vmem [shape: f32[16,8], index: 1, kind: input, shape index: {}]
  %s2 = inlined_call_operand.vmem [shape: f32[12,32], index: 2, kind: input, shape index: {}]
  %s3 = inlined_call_operand.vmem [shape: f32[32,16], index: 3, kind: input, shape index: {}]
  %s4 = inlined_call_operand.vmem [shape: f32[16,8], index: 4, kind: input, shape index: {}]
  %s5 = inlined_call_operand.vmem [shape: f32[8,16], index: 5, kind: input, shape index: {}]
  %s6 = inlined_call_operand.vmem [shape: f32[8,8], index: 6, kind: input, shape index: {}]
  %s7 = inlined_call_operand.vmem [shape: f32[8,16], index: 7, kind: input, shape index: {}]
  %s8 = inlined_call_operand.vmem [shape: f32[16,32], index: 8, kind: input, shape index: {}]
  %s9 = inlined_call_operand.vmem [shape: f32[16,80], index: 9, kind: output, shape index: {0}]
  %s10 = inlined_call_operand.vmem [shape: f32[2,2,32], index: 10, kind: output, shape index: {1}]
  %11 = xla_tuple %s9, %s10
  %s12 = sld [smem:[#allocation0]]
  $region77: #{vae_forward.2} parent=0
    _
  %s14 = ssub.s32 1, %s12
  %s15 = scalar_select 0, %s14, %s12
  loop: start=0, step=1, limit=4
  $region2: #{vae_forward.2} parent=0 // loop_pre_header
    _
  $region3: #{vae_forward.2} parent=0 // loop_header
    %s17 = sphi 0, %s21
    %p18 = scmp.ge.s32.totalorder %s17, 4
    %s27 = sphi 0, %s29
    %s30 = sphi 0, %s27
    %s31 = sphi 0, %s30
    %s47 = sphi 0, %s31
    %s53 = sphi 0, %s55
    %s56 = sphi 0, %s53
    %s57 = sphi 0, %s56
    %s73 = sphi 0, %s57
    %s77 = sphi 0, %s77
    %s79 = sphi 0, %s77
    %s80 = sphi 0, %s79
    %s94 = sphi 0, %s80
    %s98 = sphi 0, %s98
    %s100 = sphi 0, %s98
    %s101 = sphi 0, %s100
    %s115 = sphi 0, %s101
    %s119 = sphi 0, %s119
    %s121 = sphi 0, %s119
    %s122 = sphi 0, %s121
    %s136 = sphi 0, %s122
    %s140 = sphi 0, %s140
    %s142 = sphi 0, %s140
    %s143 = sphi 0, %s142
    %s157 = sphi 0, %s143
    %s161 = sphi 0, %s161
    %s163 = sphi 0, %s161
    %s164 = sphi 0, %s163
    %s178 = sphi 0, %s164
    %s182 = sphi 0, %s182
    %s184 = sphi 0, %s182
    %s185 = sphi 0, %s184
    %s199 = sphi 0, %s185
    %s203 = sphi 0, %s203
    %s205 = sphi 0, %s203
    %s206 = sphi 0, %s205
    %s220 = sphi 0, %s206
    %s226 = sphi 0, %s228
    %s229 = sphi 0, %s226
    %s230 = sphi 0, %s229
    %s246 = sphi 0, %s230
    %s252 = sphi 0, %s254
    %s255 = sphi 0, %s252
    %s256 = sphi 0, %s255
    %s272 = sphi 0, %s256
  $region4: #{vae_forward.2} parent=0 // loop_header_branch
    %20 = sbr.rel (%p18) target = $region8
  $region5: #{vae_forward.2} parent=0 // loop_body
    %s22 = ssub.s32 %s17, 1
    %s23 = ssub.s32 %s17, 2
    %s24 = sadd.s32 %s17, 1
    %s25 = ssub.s32 %s17, %s24
    %p26 = scmp.eq.s32.totalorder %s25, 0
    %s28 = sadd.s32 %s27, 1
    %s29 = scalar_select %p26, %s27, %s28
    %p32 = pneg %p26
    %p33 = scmp.eq.s32.totalorder %s17, 1
    %p34 = por %p32, %p33
    %p35 = scmp.ne.s32.totalorder %s27, %s30
    %p36 = scmp.eq.s32.totalorder %s17, 0
    %p37 = por %p35, %p36
    %p38 = scmp.ne.s32.totalorder %s27, %s30
    %p39 = scmp.eq.s32.totalorder %s22, 1
    %p40 = por %p38, %p39
    %p41 = scmp.ne.s32.totalorder %s30, %s31
    %p42 = scmp.eq.s32.totalorder %s22, 0
    %p43 = por %p41, %p42
    %p44 = scmp.ne.s32.totalorder %s30, %s31
    %p45 = scmp.eq.s32.totalorder %s23, 1
    %p46 = por %p44, %p45
    %p48 = scmp.ne.s32.totalorder %s31, %s47
    %p49 = scmp.eq.s32.totalorder %s23, 0
    %p50 = por %p48, %p49
    %s51 = ssub.s32 %s17, %s24
    %p52 = scmp.eq.s32.totalorder %s51, 0
    %s54 = sadd.s32 %s53, 1
    %s55 = scalar_select %p52, %s53, %s54
    %p58 = pneg %p52
    %p59 = scmp.eq.s32.totalorder %s17, 1
    %p60 = por %p58, %p59
    %p61 = scmp.ne.s32.totalorder %s53, %s56
    %p62 = scmp.eq.s32.totalorder %s17, 0
    %p63 = por %p61, %p62
    %p64 = scmp.ne.s32.totalorder %s53, %s56
    %p65 = scmp.eq.s32.totalorder %s22, 1
    %p66 = por %p64, %p65
    %p67 = scmp.ne.s32.totalorder %s56, %s57
    %p68 = scmp.eq.s32.totalorder %s22, 0
    %p69 = por %p67, %p68
    %p70 = scmp.ne.s32.totalorder %s56, %s57
    %p71 = scmp.eq.s32.totalorder %s23, 1
    %p72 = por %p70, %p71
    %p74 = scmp.ne.s32.totalorder %s57, %s73
    %p75 = scmp.eq.s32.totalorder %s23, 0
    %p76 = por %p74, %p75
    %s78 = sadd.s32 %s77, 1
    %p81 = scmp.eq.s32.totalorder %s17, 1
    %p82 = scmp.ne.s32.totalorder %s77, %s79
    %p83 = scmp.eq.s32.totalorder %s17, 0
    %p84 = por %p82, %p83
    %p85 = scmp.ne.s32.totalorder %s77, %s79
    %p86 = scmp.eq.s32.totalorder %s22, 1
    %p87 = por %p85, %p86
    %p88 = scmp.ne.s32.totalorder %s79, %s80
    %p89 = scmp.eq.s32.totalorder %s22, 0
    %p90 = por %p88, %p89
    %p91 = scmp.ne.s32.totalorder %s79, %s80
    %p92 = scmp.eq.s32.totalorder %s23, 1
    %p93 = por %p91, %p92
    %p95 = scmp.ne.s32.totalorder %s80, %s94
    %p96 = scmp.eq.s32.totalorder %s23, 0
    %p97 = por %p95, %p96
    %s99 = sadd.s32 %s98, 1
    %p102 = scmp.eq.s32.totalorder %s17, 1
    %p103 = scmp.ne.s32.totalorder %s98, %s100
    %p104 = scmp.eq.s32.totalorder %s17, 0
    %p105 = por %p103, %p104
    %p106 = scmp.ne.s32.totalorder %s98, %s100
    %p107 = scmp.eq.s32.totalorder %s22, 1
    %p108 = por %p106, %p107
    %p109 = scmp.ne.s32.totalorder %s100, %s101
    %p110 = scmp.eq.s32.totalorder %s22, 0
    %p111 = por %p109, %p110
    %p112 = scmp.ne.s32.totalorder %s100, %s101
    %p113 = scmp.eq.s32.totalorder %s23, 1
    %p114 = por %p112, %p113
    %p116 = scmp.ne.s32.totalorder %s101, %s115
    %p117 = scmp.eq.s32.totalorder %s23, 0
    %p118 = por %p116, %p117
    %s120 = sadd.s32 %s119, 1
    %p123 = scmp.eq.s32.totalorder %s17, 1
    %p124 = scmp.ne.s32.totalorder %s119, %s121
    %p125 = scmp.eq.s32.totalorder %s17, 0
    %p126 = por %p124, %p125
    %p127 = scmp.ne.s32.totalorder %s119, %s121
    %p128 = scmp.eq.s32.totalorder %s22, 1
    %p129 = por %p127, %p128
    %p130 = scmp.ne.s32.totalorder %s121, %s122
    %p131 = scmp.eq.s32.totalorder %s22, 0
    %p132 = por %p130, %p131
    %p133 = scmp.ne.s32.totalorder %s121, %s122
    %p134 = scmp.eq.s32.totalorder %s23, 1
    %p135 = por %p133, %p134
    %p137 = scmp.ne.s32.totalorder %s122, %s136
    %p138 = scmp.eq.s32.totalorder %s23, 0
    %p139 = por %p137, %p138
    %s141 = sadd.s32 %s140, 1
    %p144 = scmp.eq.s32.totalorder %s17, 1
    %p145 = scmp.ne.s32.totalorder %s140, %s142
    %p146 = scmp.eq.s32.totalorder %s17, 0
    %p147 = por %p145, %p146
    %p148 = scmp.ne.s32.totalorder %s140, %s142
    %p149 = scmp.eq.s32.totalorder %s22, 1
    %p150 = por %p148, %p149
    %p151 = scmp.ne.s32.totalorder %s142, %s143
    %p152 = scmp.eq.s32.totalorder %s22, 0
    %p153 = por %p151, %p152
    %p154 = scmp.ne.s32.totalorder %s142, %s143
    %p155 = scmp.eq.s32.totalorder %s23, 1
    %p156 = por %p154, %p155
    %p158 = scmp.ne.s32.totalorder %s143, %s157
    %p159 = scmp.eq.s32.totalorder %s23, 0
    %p160 = por %p158, %p159
    %s162 = sadd.s32 %s161, 1
    %p165 = scmp.eq.s32.totalorder %s17, 1
    %p166 = scmp.ne.s32.totalorder %s161, %s163
    %p167 = scmp.eq.s32.totalorder %s17, 0
    %p168 = por %p166, %p167
    %p169 = scmp.ne.s32.totalorder %s161, %s163
    %p170 = scmp.eq.s32.totalorder %s22, 1
    %p171 = por %p169, %p170
    %p172 = scmp.ne.s32.totalorder %s163, %s164
    %p173 = scmp.eq.s32.totalorder %s22, 0
    %p174 = por %p172, %p173
    %p175 = scmp.ne.s32.totalorder %s163, %s164
    %p176 = scmp.eq.s32.totalorder %s23, 1
    %p177 = por %p175, %p176
    %p179 = scmp.ne.s32.totalorder %s164, %s178
    %p180 = scmp.eq.s32.totalorder %s23, 0
    %p181 = por %p179, %p180
    %s183 = sadd.s32 %s182, 1
    %p186 = scmp.eq.s32.totalorder %s17, 1
    %p187 = scmp.ne.s32.totalorder %s182, %s184
    %p188 = scmp.eq.s32.totalorder %s17, 0
    %p189 = por %p187, %p188
    %p190 = scmp.ne.s32.totalorder %s182, %s184
    %p191 = scmp.eq.s32.totalorder %s22, 1
    %p192 = por %p190, %p191
    %p193 = scmp.ne.s32.totalorder %s184, %s185
    %p194 = scmp.eq.s32.totalorder %s22, 0
    %p195 = por %p193, %p194
    %p196 = scmp.ne.s32.totalorder %s184, %s185
    %p197 = scmp.eq.s32.totalorder %s23, 1
    %p198 = por %p196, %p197
    %p200 = scmp.ne.s32.totalorder %s185, %s199
    %p201 = scmp.eq.s32.totalorder %s23, 0
    %p202 = por %p200, %p201
    %s204 = sadd.s32 %s203, 1
    %p207 = scmp.eq.s32.totalorder %s17, 1
    %p208 = scmp.ne.s32.totalorder %s203, %s205
    %p209 = scmp.eq.s32.totalorder %s17, 0
    %p210 = por %p208, %p209
    %p211 = scmp.ne.s32.totalorder %s203, %s205
    %p212 = scmp.eq.s32.totalorder %s22, 1
    %p213 = por %p211, %p212
    %p214 = scmp.ne.s32.totalorder %s205, %s206
    %p215 = scmp.eq.s32.totalorder %s22, 0
    %p216 = por %p214, %p215
    %p217 = scmp.ne.s32.totalorder %s205, %s206
    %p218 = scmp.eq.s32.totalorder %s23, 1
    %p219 = por %p217, %p218
    %p221 = scmp.ne.s32.totalorder %s206, %s220
    %p222 = scmp.eq.s32.totalorder %s23, 0
    %p223 = por %p221, %p222
    %s224 = ssub.s32 %s17, %s24
    %p225 = scmp.eq.s32.totalorder %s224, 0
    %s227 = sadd.s32 %s226, 1
    %s228 = scalar_select %p225, %s226, %s227
    %p231 = pneg %p225
    %p232 = scmp.eq.s32.totalorder %s17, 1
    %p233 = por %p231, %p232
    %p234 = scmp.ne.s32.totalorder %s226, %s229
    %p235 = scmp.eq.s32.totalorder %s17, 0
    %p236 = por %p234, %p235
    %p237 = scmp.ne.s32.totalorder %s226, %s229
    %p238 = scmp.eq.s32.totalorder %s22, 1
    %p239 = por %p237, %p238
    %p240 = scmp.ne.s32.totalorder %s229, %s230
    %p241 = scmp.eq.s32.totalorder %s22, 0
    %p242 = por %p240, %p241
    %p243 = scmp.ne.s32.totalorder %s229, %s230
    %p244 = scmp.eq.s32.totalorder %s23, 1
    %p245 = por %p243, %p244
    %p247 = scmp.ne.s32.totalorder %s230, %s246
    %p248 = scmp.eq.s32.totalorder %s23, 0
    %p249 = por %p247, %p248
    %s250 = ssub.s32 %s17, %s24
    %p251 = scmp.eq.s32.totalorder %s250, 0
    %s253 = sadd.s32 %s252, 1
    %s254 = scalar_select %p251, %s252, %s253
    %p257 = pneg %p251
    %p258 = scmp.eq.s32.totalorder %s17, 1
    %p259 = por %p257, %p258
    %p260 = scmp.ne.s32.totalorder %s252, %s255
    %p261 = scmp.eq.s32.totalorder %s17, 0
    %p262 = por %p260, %p261
    %p263 = scmp.ne.s32.totalorder %s252, %s255
    %p264 = scmp.eq.s32.totalorder %s22, 1
    %p265 = por %p263, %p264
    %p266 = scmp.ne.s32.totalorder %s255, %s256
    %p267 = scmp.eq.s32.totalorder %s22, 0
    %p268 = por %p266, %p267
    %p269 = scmp.ne.s32.totalorder %s255, %s256
    %p270 = scmp.eq.s32.totalorder %s23, 1
    %p271 = por %p269, %p270
    %p273 = scmp.ne.s32.totalorder %s256, %s272
    %p274 = scmp.eq.s32.totalorder %s23, 0
    %p275 = por %p273, %p274
    %p276 = scmp.le.s32.totalorder 1, %s17
    %p277 = scmp.lt.s32.totalorder %s17, 3
    %p278 = pnand %p276, %p277
    %p279 = pneg %p278
    // Predicated region
    $region9: #{vae_forward.2} parent=5 // pred_check
      _
    $region10: #{vae_forward.2} parent=5 // pred_check_branch
      %281 = sbr.rel (%p278) target = $region12
    $region11: #{vae_forward.2} parent=5 // pred_region
      %s282 = ssub.s32 %s17, 1
      // Predicated region
      $region13: #{vae_forward.2} parent=11 // pred_check
        %p283 = pneg %p90
      $region14: #{vae_forward.2} parent=11 // pred_check_branch
        %285 = sbr.rel (%p283) target = $region16
      $region15: #{vae_forward.2} parent=11 // pred_region
        _
      $region16: #{vae_forward.2} parent=11 // pred_fallthru
        _
      // Predicated region
      $region17: #{vae_forward.2} parent=11 // pred_check
        %p286 = pneg %p111
      $region18: #{vae_forward.2} parent=11 // pred_check_branch
        %288 = sbr.rel (%p286) target = $region20
      $region19: #{vae_forward.2} parent=11 // pred_region
        _
      $region20: #{vae_forward.2} parent=11 // pred_fallthru
        _
      // Predicated region
      $region21: #{vae_forward.2} parent=11 // pred_check
        %p289 = pneg %p132
      $region22: #{vae_forward.2} parent=11 // pred_check_branch
        %291 = sbr.rel (%p289) target = $region24
      $region23: #{vae_forward.2} parent=11 // pred_region
        _
      $region24: #{vae_forward.2} parent=11 // pred_fallthru
        _
      // Predicated region
      $region25: #{vae_forward.2} parent=11 // pred_check
        %p292 = pneg %p153
      $region26: #{vae_forward.2} parent=11 // pred_check_branch
        %294 = sbr.rel (%p292) target = $region28
      $region27: #{vae_forward.2} parent=11 // pred_region
        _
      $region28: #{vae_forward.2} parent=11 // pred_fallthru
        _
      // Predicated region
      $region29: #{vae_forward.2} parent=11 // pred_check
        %p295 = pneg %p174
      $region30: #{vae_forward.2} parent=11 // pred_check_branch
        %297 = sbr.rel (%p295) target = $region32
      $region31: #{vae_forward.2} parent=11 // pred_region
        _
      $region32: #{vae_forward.2} parent=11 // pred_fallthru
        _
      // Predicated region
      $region33: #{vae_forward.2} parent=11 // pred_check
        %p298 = pneg %p195
      $region34: #{vae_forward.2} parent=11 // pred_check_branch
        %300 = sbr.rel (%p298) target = $region36
      $region35: #{vae_forward.2} parent=11 // pred_region
        _
      $region36: #{vae_forward.2} parent=11 // pred_fallthru
        _
      // Predicated region
      $region37: #{vae_forward.2} parent=11 // pred_check
        %p301 = pneg %p216
      $region38: #{vae_forward.2} parent=11 // pred_check_branch
        %303 = sbr.rel (%p301) target = $region40
      $region39: #{vae_forward.2} parent=11 // pred_region
        _
      $region40: #{vae_forward.2} parent=11 // pred_fallthru
        _
    $region12: #{vae_forward.2} parent=5 // pred_fallthru
      _
    %p304 = scmp.lt.s32.totalorder %s17, 2
    // Predicated region
    $region41: #{vae_forward.2} parent=5 // pred_check
      %p305 = pneg %p304
    $region42: #{vae_forward.2} parent=5 // pred_check_branch
      %307 = sbr.rel (%p305) target = $region44
    $region43: #{vae_forward.2} parent=5 // pred_region
      // Predicated region
      $region45: #{vae_forward.2} parent=43 // pred_check
        %p308 = pneg %p37
      $region46: #{vae_forward.2} parent=43 // pred_check_branch
        %310 = sbr.rel (%p308) target = $region48
      $region47: #{vae_forward.2} parent=43 // pred_region
        %p311 = scmp.lt.s32.totalorder %s17, 1
        %s312 = scalar_select %p311, %s17, 1
        %s313 = smul.addr %s312, 8
        %s314 = scalar_lea.vmem %s0, %s313
      $region48: #{vae_forward.2} parent=43 // pred_fallthru
        _
      // Predicated region
      $region49: #{vae_forward.2} parent=43 // pred_check
        %p315 = pneg %p63
      $region50: #{vae_forward.2} parent=43 // pred_check_branch
        %317 = sbr.rel (%p315) target = $region52
      $region51: #{vae_forward.2} parent=43 // pred_region
        %p318 = scmp.lt.s32.totalorder %s17, 1
        %s319 = scalar_select %p318, %s17, 1
        %s320 = smul.addr %s319, 8
        %s321 = scalar_lea.vmem %s1, %s320
      $region52: #{vae_forward.2} parent=43 // pred_fallthru
        _
    $region44: #{vae_forward.2} parent=5 // pred_fallthru
      _
    %p322 = scmp.le.s32.totalorder 1, %s17
    %p323 = scmp.lt.s32.totalorder %s17, 3
    %p324 = pnand %p322, %p323
    %p325 = pneg %p324
    // Predicated region
    $region53: #{vae_forward.2} parent=5 // pred_check
      _
    $region54: #{vae_forward.2} parent=5 // pred_check_branch
      %327 = sbr.rel (%p324) target = $region56
    $region55: #{vae_forward.2} parent=5 // pred_region
      %s328 = ssub.s32 %s17, 1
      %p329 = scmp.lt.s32.totalorder %s22, 1
      %s330 = scalar_select %p329, %s22, 1
      %s331 = smul.addr %s330, 8
      %s332 = scalar_lea.vmem %s0, %s331
      %p333 = pneg %p43
      %p334 = pneg %p40
      %p335 = scmp.lt.s32.totalorder %s22, 1
      %s336 = scalar_select %p335, %s22, 1
      %s337 = smul.addr %s336, 8
      %s338 = scalar_lea.vmem %s1, %s337
      %p339 = pneg %p69
      %p340 = pneg %p66
      %p341 = pneg %p90
      %p342 = pneg %p87
      %p343 = pneg %p111
      %p344 = pneg %p108
      %p345 = pneg %p132
      %p346 = pneg %p129
      %p347 = pneg %p153
      %p348 = pneg %p150
      %p349 = pneg %p174
      %p350 = pneg %p171
      %p351 = pneg %p195
      %p352 = pneg %p192
      %p353 = pneg %p216
      %p354 = pneg %p213
      %p355 = pneg %p242
      %p356 = pneg %p239
      %p357 = scmp.lt.s32.totalorder %s22, 1
      %s358 = scalar_select %p357, %s22, 1
      %s359 = smul.addr %s358, 8
      %s360 = scalar_lea.vmem %s9, %s359
      %p361 = pneg %p268
      %p362 = pneg %p265
      %p363 = scmp.lt.s32.totalorder %s22, 1
      %s364 = scalar_select %p363, %s22, 1
      %s365 = smul.addr %s364, 2
      %s366 = scalar_lea.vmem %s10, %s365
      %p367 = scmp.lt.s32.totalorder %s22, 1
      %s368 = scalar_select %p367, %s22, 1
      %s369 = smul.addr %s368, 8
      %s370 = scalar_lea.vmem %s0, %s369
      %p371 = scmp.lt.s32.totalorder %s22, 1
      %s372 = scalar_select %p371, %s22, 1
      %s373 = smul.addr %s372, 8
      %s374 = scalar_lea.vmem %s1, %s373
      %p375 = scmp.lt.s32.totalorder %s22, 1
      %s376 = scalar_select %p375, %s22, 1
      %s377 = smul.addr %s376, 8
      %s378 = scalar_lea.vmem %s9, %s377
      %p379 = scmp.lt.s32.totalorder %s22, 1
      %s380 = scalar_select %p379, %s22, 1
      %s381 = smul.addr %s380, 2
      %s382 = scalar_lea.vmem %s10, %s381
      %v383 = vld [vmem:[%s2] sm:$0xff]
      %v384 = vld [vmem:[%s2 + $0x8] sm:$0xf]
      %v385 = vld [vmem:[%s370] sm:$0xff]
      %v386 = vperm.slane %v384, 2
      %v387 = vmul.f32 %v385, %v386
      %v388 = vperm.slane %v384, 3
      %v389 = vadd.f32 %v387, %v388
      %v390 = vld [vmem:[%s3] sm:$0xff]
      %v391 = vld [vmem:[%s3 + $0x8] sm:$0xff]
      %v392 = vld [vmem:[%s3 + $0x10] sm:$0xff]
      %v393 = vld [vmem:[%s3 + $0x18] sm:$0xff]
      %v394 = vperm.slane %v383, 2
      %vm395 = vcmask 261120
      %v397 = vsel %vm395, %v389, 0
      %399 = vmatpush.msra.mxu0 0.0
      %400 = vmatpush.msra.mxu0 0.0
      %401 = vmatpush.msra.mxu0 0.0
      %402 = vmatpush.msra.mxu0 0.0
      %403 = vmatpush.msra.mxu0 0.0
      %404 = vmatpush.msra.mxu0 0.0
      %405 = vmatpush.msra.mxu0 0.0
      %406 = vmatpush.msra.mxu0 0.0
      %407 = vmatpush.msra.mxu0 0.0
      %408 = vmatpush.msra.mxu0 0.0
      %409 = vmatpush.msra.mxu0 0.0
      %410 = vmatpush.msra.mxu0 0.0
      %411 = vmatpush.msra.mxu0 %v393
      %412 = vmatpush.msra.mxu0 %v392
      %413 = vmatpush.msra.mxu0 %v391
      %414 = vmatpush.msra.mxu0 %v390
      %415 = vmatmul.f32.gmra.mxu0 %v397
      %v416 = vpop.f32.mrf.mxu0
      %v417 = vadd.f32 %v394, %v416
      %418 = vdwg.mxu0
      %v419 = vxor.u32 %v417, 2147483648
      %v420 = vmul.f32 %v419, 1.442695
      %v421 = vpow.pop %v420
      %v422 = vadd.f32 %v421, 1.0
      %v423 = vrcp.pop %v422
      %v424 = vmul.f32 %v422, %v423
      %v425 = vsub.f32 1.0, %v424
      %v426 = vmul.f32 %v423, %v425
      %v427 = vadd.f32 %v423, %v426
      %vm428 = vweird.f32 %v422
      %vm429 = vweird.f32 %v423
      %vm430 = vmor %vm428, %vm429
      %v431 = vsel %vm430, %v423, %v427
      %v432 = vand.u32 2147483647, %v422
      %vm433 = vcmp.eq.f32.partialorder %v432, 8.507059e+37
      %v434 = vand.u32 %v422, 2147483648
      %v435 = vor.u32 1.1754944e-38, %v434
      %v436 = vsel %vm433, %v435, %v431
      %v437 = vmul.f32 1.0, %v436
      %v438 = vmul.f32 %v417, %v437
      %v439 = vld [vmem:[%s4] sm:$0xff]
      %v440 = vld [vmem:[%s4 + $0x8] sm:$0xff]
      %v441 = vperm.slane %v383, 3
      %vm442 = vcmask 130048
      %v444 = vsel %vm442, %v438, 0
      %446 = vmatpush.msra.mxu0 0.0
      %447 = vmatpush.msra.mxu0 0.0
      %448 = vmatpush.msra.mxu0 0.0
      %449 = vmatpush.msra.mxu0 0.0
      %450 = vmatpush.msra.mxu0 0.0
      %451 = vmatpush.msra.mxu0 0.0
      %452 = vmatpush.msra.mxu0 0.0
      %453 = vmatpush.msra.mxu0 0.0
      %454 = vmatpush.msra.mxu0 0.0
      %455 = vmatpush.msra.mxu0 0.0
      %456 = vmatpush.msra.mxu0 0.0
      %457 = vmatpush.msra.mxu0 0.0
      %458 = vmatpush.msra.mxu0 0.0
      %459 = vmatpush.msra.mxu0 0.0
      %460 = vmatpush.msra.mxu0 %v440
      %461 = vmatpush.msra.mxu0 %v439
      %462 = vmatmul.f32.gmra.mxu0 %v444
      %v463 = vpop.f32.mrf.mxu0
      %v464 = vadd.f32 %v441, %v463
      %465 = vdwg.mxu0
      %v466 = vxor.u32 %v464, 2147483648
      %v467 = vmul.f32 %v466, 1.442695
      %v468 = vpow.pop %v467
      %v469 = vadd.f32 %v468, 1.0
      %v470 = vrcp.pop %v469
      %v471 = vmul.f32 %v469, %v470
      %v472 = vsub.f32 1.0, %v471
      %v473 = vmul.f32 %v470, %v472
      %v474 = vadd.f32 %v470, %v473
      %vm475 = vweird.f32 %v469
      %vm476 = vweird.f32 %v470
      %vm477 = vmor %vm475, %vm476
      %v478 = vsel %vm477, %v470, %v474
      %v479 = vand.u32 2147483647, %v469
      %vm480 = vcmp.eq.f32.partialorder %v479, 8.507059e+37
      %v481 = vand.u32 %v469, 2147483648
      %v482 = vor.u32 1.1754944e-38, %v481
      %v483 = vsel %vm480, %v482, %v478
      %v484 = vmul.f32 1.0, %v483
      %v485 = vmul.f32 %v464, %v484
      %v486 = vld [vmem:[%s5] sm:$0xff]
      %v487 = vperm.slane %v383, 4
      %vm488 = vcmask 64512
      %v490 = vsel %vm488, %v485, 0
      %492 = vmatpush.msra.mxu0 0.0
      %493 = vmatpush.msra.mxu0 0.0
      %494 = vmatpush.msra.mxu0 0.0
      %495 = vmatpush.msra.mxu0 0.0
      %496 = vmatpush.msra.mxu0 0.0
      %497 = vmatpush.msra.mxu0 0.0
      %498 = vmatpush.msra.mxu0 0.0
      %499 = vmatpush.msra.mxu0 0.0
      %500 = vmatpush.msra.mxu0 0.0
      %501 = vmatpush.msra.mxu0 0.0
      %502 = vmatpush.msra.mxu0 0.0
      %503 = vmatpush.msra.mxu0 0.0
      %504 = vmatpush.msra.mxu0 0.0
      %505 = vmatpush.msra.mxu0 0.0
      %506 = vmatpush.msra.mxu0 0.0
      %507 = vmatpush.msra.mxu0 %v486
      %508 = vmatmul.f32.gmra.mxu0 %v490
      %v509 = vpop.f32.mrf.mxu0
      %v510 = vadd.f32 %v487, %v509
      %511 = vdwg.mxu0
      %v512 = vmul.f32 %v510, 0.5
      %v513 = vmul.f32 %v512, 1.442695
      %v514 = vpow.pop %v513
      %v515 = vld [vmem:[%s374] sm:$0xff]
      %517 = vrot.lane.b32.xlu0 %v515, 8
      %v518 = vpop.permute.xlu0 %517
      %v520 = vmul.f32 %v514, %v518
      %522 = vrot.lane.b32.xlu0 %v520, 120
      %v523 = vpop.permute.xlu0 %522
      %v525 = vadd.f32 %v510, %v523
      %v526 = vld [vmem:[%s6] sm:$0xff]
      %v527 = vperm.slane %v383, 5
      %v529 = vsel %vm488, %v525, 0
      %531 = vmatpush.msra.mxu0 0.0
      %532 = vmatpush.msra.mxu0 0.0
      %533 = vmatpush.msra.mxu0 0.0
      %534 = vmatpush.msra.mxu0 0.0
      %535 = vmatpush.msra.mxu0 0.0
      %536 = vmatpush.msra.mxu0 0.0
      %537 = vmatpush.msra.mxu0 0.0
      %538 = vmatpush.msra.mxu0 0.0
      %539 = vmatpush.msra.mxu0 0.0
      %540 = vmatpush.msra.mxu0 0.0
      %541 = vmatpush.msra.mxu0 0.0
      %542 = vmatpush.msra.mxu0 0.0
      %543 = vmatpush.msra.mxu0 0.0
      %544 = vmatpush.msra.mxu0 0.0
      %545 = vmatpush.msra.mxu0 0.0
      %546 = vmatpush.msra.mxu0 %v526
      %547 = vmatmul.f32.gmra.mxu0 %v529
      %v548 = vpop.f32.mrf.mxu0
      %v549 = vadd.f32 %v527, %v548
      %550 = vdwg.mxu0
      %v551 = vxor.u32 %v549, 2147483648
      %v552 = vmul.f32 %v551, 1.442695
      %v553 = vpow.pop %v552
      %v554 = vadd.f32 %v553, 1.0
      %v555 = vrcp.pop %v554
      %v556 = vmul.f32 %v554, %v555
      %v557 = vsub.f32 1.0, %v556
      %v558 = vmul.f32 %v555, %v557
      %v559 = vadd.f32 %v555, %v558
      %vm560 = vweird.f32 %v554
      %vm561 = vweird.f32 %v555
      %vm562 = vmor %vm560, %vm561
      %v563 = vsel %vm562, %v555, %v559
      %v564 = vand.u32 2147483647, %v554
      %vm565 = vcmp.eq.f32.partialorder %v564, 8.507059e+37
      %v566 = vand.u32 %v554, 2147483648
      %v567 = vor.u32 1.1754944e-38, %v566
      %v568 = vsel %vm565, %v567, %v563
      %v569 = vmul.f32 1.0, %v568
      %v570 = vmul.f32 %v549, %v569
      %v571 = vld [vmem:[%s7] sm:$0xff]
      %v572 = vperm.slane %v383, 6
      %v574 = vsel %vm488, %v570, 0
      %576 = vmatpush.msra.mxu0 0.0
      %577 = vmatpush.msra.mxu0 0.0
      %578 = vmatpush.msra.mxu0 0.0
      %579 = vmatpush.msra.mxu0 0.0
      %580 = vmatpush.msra.mxu0 0.0
      %581 = vmatpush.msra.mxu0 0.0
      %582 = vmatpush.msra.mxu0 0.0
      %583 = vmatpush.msra.mxu0 0.0
      %584 = vmatpush.msra.mxu0 0.0
      %585 = vmatpush.msra.mxu0 0.0
      %586 = vmatpush.msra.mxu0 0.0
      %587 = vmatpush.msra.mxu0 0.0
      %588 = vmatpush.msra.mxu0 0.0
      %589 = vmatpush.msra.mxu0 0.0
      %590 = vmatpush.msra.mxu0 0.0
      %591 = vmatpush.msra.mxu0 %v571
      %592 = vmatmul.f32.gmra.mxu0 %v574
      %v593 = vpop.f32.mrf.mxu0
      %v594 = vadd.f32 %v572, %v593
      %595 = vdwg.mxu0
      %v596 = vxor.u32 %v594, 2147483648
      %v597 = vmul.f32 %v596, 1.442695
      %v598 = vpow.pop %v597
      %v599 = vadd.f32 %v598, 1.0
      %v600 = vrcp.pop %v599
      %v601 = vmul.f32 %v599, %v600
      %v602 = vsub.f32 1.0, %v601
      %v603 = vmul.f32 %v600, %v602
      %v604 = vadd.f32 %v600, %v603
      %vm605 = vweird.f32 %v599
      %vm606 = vweird.f32 %v600
      %vm607 = vmor %vm605, %vm606
      %v608 = vsel %vm607, %v600, %v604
      %v609 = vand.u32 2147483647, %v599
      %vm610 = vcmp.eq.f32.partialorder %v609, 8.507059e+37
      %v611 = vand.u32 %v599, 2147483648
      %v612 = vor.u32 1.1754944e-38, %v611
      %v613 = vsel %vm610, %v612, %v608
      %v614 = vmul.f32 1.0, %v613
      %v615 = vmul.f32 %v594, %v614
      %v616 = vld [vmem:[%s8] sm:$0xff]
      %v617 = vld [vmem:[%s8 + $0x8] sm:$0xff]
      %v618 = vperm.slane %v383, 7
      %v620 = vsel %vm442, %v615, 0
      %622 = vmatpush.msra.mxu0 0.0
      %623 = vmatpush.msra.mxu0 0.0
      %624 = vmatpush.msra.mxu0 0.0
      %625 = vmatpush.msra.mxu0 0.0
      %626 = vmatpush.msra.mxu0 0.0
      %627 = vmatpush.msra.mxu0 0.0
      %628 = vmatpush.msra.mxu0 0.0
      %629 = vmatpush.msra.mxu0 0.0
      %630 = vmatpush.msra.mxu0 0.0
      %631 = vmatpush.msra.mxu0 0.0
      %632 = vmatpush.msra.mxu0 0.0
      %633 = vmatpush.msra.mxu0 0.0
      %634 = vmatpush.msra.mxu0 0.0
      %635 = vmatpush.msra.mxu0 0.0
      %636 = vmatpush.msra.mxu0 %v617
      %637 = vmatpush.msra.mxu0 %v616
      %638 = vmatmul.f32.gmra.mxu0 %v620
      %v639 = vpop.f32.mrf.mxu0
      %v640 = vadd.f32 %v618, %v639
      %641 = vdwg.mxu0
      %642 = vrot.lane.b32.xlu0 %v389, 32
      %v643 = vpop.permute.xlu0 %642
      %646 = vrot.lane.b32.xlu0 %v510, 64
      %v647 = vpop.permute.xlu0 %646
      %v649 = vsel %vm395, %v640, %v643
      %vm650 = vcmask 523264
      %v651 = vsel %vm650, %v649, %v647
      %vm652 = vcmask 654336
      %653 = vst.msk [vmem:[%s378] sm:$0xff] %vm652, %v651
      %v654 = vsel %vm395, %v640, 0.0
      %v655 = vrot.slane %v654, 4
      %v656 = vadd.f32 %v654, %v655
      %v657 = vrot.slane %v656, 2
      %v658 = vadd.f32 %v656, %v657
      %v659 = vrot.slane %v658, 1
      %v660 = vadd.f32 %v658, %v659
      %v661 = vmul.f32 %v640, %v640
      %v662 = vsel %vm395, %v661, 0.0
      %v663 = vrot.slane %v662, 4
      %v664 = vadd.f32 %v662, %v663
      %v665 = vrot.slane %v664, 2
      %v666 = vadd.f32 %v664, %v665
      %v667 = vrot.slane %v666, 1
      %v668 = vadd.f32 %v666, %v667
      %vm669 = vcmask 1040384
      %v670 = vsel %vm669, %v660, %v668
      %vm671 = vcmask 254976
      %672 = vst.msk [vmem:[%s382] sm:$0x3] %vm671, %v670
      %p673 = scmp.lt.s32.totalorder %s22, 1
      %s674 = scalar_select %p673, %s22, 1
      %s675 = smul.addr %s674, 8
      %s676 = scalar_lea.vmem %s9, %s675
      %p677 = scmp.lt.s32.totalorder %s22, 1
      %s678 = scalar_select %p677, %s22, 1
      %s679 = smul.addr %s678, 2
      %s680 = scalar_lea.vmem %s10, %s679
      // Predicated region
      $region57: #{vae_forward.2} parent=55 // pred_check
        %p681 = pneg %p239
      $region58: #{vae_forward.2} parent=55 // pred_check_branch
        %683 = sbr.rel (%p681) target = $region60
      $region59: #{vae_forward.2} parent=55 // pred_region
        _
      $region60: #{vae_forward.2} parent=55 // pred_fallthru
        _
      // Predicated region
      $region61: #{vae_forward.2} parent=55 // pred_check
        %p684 = pneg %p265
      $region62: #{vae_forward.2} parent=55 // pred_check_branch
        %686 = sbr.rel (%p684) target = $region64
      $region63: #{vae_forward.2} parent=55 // pred_region
        _
      $region64: #{vae_forward.2} parent=55 // pred_fallthru
        _
    $region56: #{vae_forward.2} parent=5 // pred_fallthru
      _
    %p687 = scmp.le.s32.totalorder 2, %s17
    // Predicated region
    $region65: #{vae_forward.2} parent=5 // pred_check
      %p688 = pneg %p687
    $region66: #{vae_forward.2} parent=5 // pred_check_branch
      %690 = sbr.rel (%p688) target = $region68
    $region67: #{vae_forward.2} parent=5 // pred_region
      %s691 = ssub.s32 %s17, 2
      // Predicated region
      $region69: #{vae_forward.2} parent=67 // pred_check
        %p692 = pneg %p245
      $region70: #{vae_forward.2} parent=67 // pred_check_branch
        %694 = sbr.rel (%p692) target = $region72
      $region71: #{vae_forward.2} parent=67 // pred_region
        %p695 = scmp.lt.s32.totalorder %s23, 1
        %s696 = scalar_select %p695, %s23, 1
        %s697 = smul.addr %s696, 8
        %s698 = scalar_lea.vmem %s9, %s697
      $region72: #{vae_forward.2} parent=67 // pred_fallthru
        _
      // Predicated region
      $region73: #{vae_forward.2} parent=67 // pred_check
        %p699 = pneg %p271
      $region74: #{vae_forward.2} parent=67 // pred_check_branch
        %701 = sbr.rel (%p699) target = $region76
      $region75: #{vae_forward.2} parent=67 // pred_region
        %p702 = scmp.lt.s32.totalorder %s23, 1
        %s703 = scalar_select %p702, %s23, 1
        %s704 = smul.addr %s703, 2
        %s705 = scalar_lea.vmem %s10, %s704
      $region76: #{vae_forward.2} parent=67 // pred_fallthru
        _
    $region68: #{vae_forward.2} parent=5 // pred_fallthru
      _
  $region6: #{vae_forward.2} parent=0 // loop_footer
    %s21 = sadd.s32 1, %s17
  $region7: #{vae_forward.2} parent=0 // loop_footer_branch
    %16 = sbr.rel target = $region3
  $region8: #{vae_forward.2} parent=0 // loop_exit
    _

</llo_original>
